<compile_context>
chip_gen: v7x
topology: tpu7x:2x2x1
jax: 0.10.0
libtpu: 0.0.40
codegen_flags: <defaults>
</compile_context>

<pallas_src>
import math

import jax
import jax.numpy as jnp
from jax.experimental import pallas as pl
from jax.experimental.pallas import tpu as pltpu


# ----------------------------------------------------------------------------
# Generation-aware sizing helpers
# ----------------------------------------------------------------------------
def _vmem_capacity_bytes():
    try:
        return int(pltpu.get_tpu_info().vmem_capacity_bytes)
    except Exception:
        return 128 * 1024 * 1024              # v5e/v6e default


def _block_budget_bytes():
    # v7x: 64 MiB physical VMEM per TC -> smaller streaming blocks;
    # v5e/v6e: 128 MiB -> larger blocks to amortize per-grid-step overhead.
    cap = _vmem_capacity_bytes()
    return 4 * 1024 * 1024 if cap <= 64 * 1024 * 1024 else 8 * 1024 * 1024


def _vmem_limit_bytes(bytes_needed):
    cap = _vmem_capacity_bytes()
    return int(min(max(bytes_needed, 16 * 1024 * 1024), int(0.8 * cap)))


# ----------------------------------------------------------------------------
# Kernel 1: per-batch masked prototype extraction (tiled over the S*N tokens)
#   proto[b] = sum_t mask[b,t] * s_f[b,t,:] / (count_fg[b] + 1e-4)
#   sign[b]  = 1 if count_fg[b] > 0.5 else count_fg[b]
# Raw sums are accumulated in the resident output blocks (constant output
# index along the reduction axis) and finalized on the last reduction step.
# ----------------------------------------------------------------------------
def _make_extract_kernel(sn, tk, needs_mask):
    def kernel(sf_ref, m_ref, proto_ref, sign_ref):
        k = pl.program_id(1)
        last = pl.num_programs(1) - 1

        @pl.when(k == 0)
        def _():
            proto_ref[...] = jnp.zeros_like(proto_ref)
            sign_ref[...] = jnp.zeros_like(sign_ref)

        def accumulate(apply_oob_mask):
            sf = sf_ref[0]            # [tk, D]
            m = m_ref[0]              # [1, tk]
            if apply_oob_mask:        # static python flag
                # Both operands must be zeroed (0 * NaN = NaN): OOB padding of
                # the last block is undefined VMEM.
                base = k * tk
                col = jax.lax.broadcasted_iota(jnp.int32, (1, tk), 1) + base
                m = jnp.where(col < sn, m, 0.0)
                row = jax.lax.broadcasted_iota(jnp.int32, sf.shape, 0) + base
                sf = jnp.where(row < sn, sf, 0.0)
            # masked sum as an MXU matvec (frees VPU/XLU slots)
            proto_ref[0] += jnp.dot(m, sf, preferred_element_type=jnp.float32)
            sign_ref[0] += jnp.sum(m, axis=-1, keepdims=True)

        if needs_mask:
            # OOB masking only on the single partial last step; hot steps unmasked.
            @pl.when(k < last)
            def _():
                accumulate(False)

            @pl.when(k == last)
            def _():
                accumulate(True)
        else:
            accumulate(False)

        @pl.when(k == last)
        def _():
            cnt = sign_ref[0]                               # [1, 1]
            proto_ref[0] = proto_ref[0] / (cnt + 1e-4)
            sign_ref[0] = jnp.where(cnt > 0.5, 1.0, cnt)

    return kernel


def extract_semantic_prototype(s_f_flat, mask, *, target_block_bytes=None):
    # s_f_flat: [B, S*N, D] f32,  mask: [B, 1, S*N] f32
    B, SN, D = s_f_flat.shape
    if target_block_bytes is None:
        target_block_bytes = _block_budget_bytes()

    rows_budget = max(128, target_block_bytes // (D * 4))
    if SN <= rows_budget:
        tk = SN                                   # single reduction step
        needs_mask = False
    else:
        tk = (rows_budget // 128) * 128           # lane-aligned mask tiles
        needs_mask = (SN % tk) != 0
        if needs_mask:
            # prefer a tile that divides SN (>= half the budget) so the OOB
            # mask is never emitted at all
            cand = tk
            while cand >= max(128, tk // 2):
                if SN % cand == 0:
                    tk = cand
                    needs_mask = False
                    break
                cand -= 128
    num_k = pl.cdiv(SN, tk)

    sf_spec = pl.BlockSpec((1, tk, D), lambda b, k: (b, k, 0))
    if num_k >= 3:
        # pure streaming reduction: a third input buffer hides DMA issue jitter
        try:
            sf_spec = pl.BlockSpec((1, tk, D), lambda b, k: (b, k, 0),
                                   pipeline_mode=pl.Buffered(3))
        except (AttributeError, TypeError):
            pass  # older API: fall back to default double-buffering

    vmem_need = 3 * tk * D * 4 + 2 * tk * 4 + (4 << 20)

    # NOTE(v7x): grid=(B, num_k) — with B == 1 only one TensorCore is used.
    proto, sign = pl.pallas_call(
        _make_extract_kernel(SN, tk, needs_mask),
        out_shape=(jax.ShapeDtypeStruct((B, 1, D), jnp.float32),
                   jax.ShapeDtypeStruct((B, 1, 1), jnp.float32)),
        grid=(B, num_k),
        in_specs=[sf_spec,
                  pl.BlockSpec((1, 1, tk), lambda b, k: (b, 0, k))],
        out_specs=(pl.BlockSpec((1, 1, D), lambda b, k: (b, 0, 0)),
                   pl.BlockSpec((1, 1, 1), lambda b, k: (b, 0, 0))),
        compiler_params=pltpu.CompilerParams(
            dimension_semantics=("parallel", "arbitrary"),
            vmem_limit_bytes=_vmem_limit_bytes(vmem_need)),
    )(s_f_flat, mask)
    return proto[:, 0, :], sign[:, 0, 0]


# ----------------------------------------------------------------------------
# Kernel 2: fused feature enhancement + bottleneck MLP.
#   sim  = (f . p_scaled) * rsqrt(max(sum(f*f), 1e-24))   (== normalize(f) . p)
#   enh  = f * (relu6(sim) + 1)
#   out  = relu(enh @ Wd + bd) @ Wu + bu      (bf16 MXU operands, f32 accum)
# Every token row is independent (reductions only over D), so OOB garbage in
# partial row/token blocks only produces garbage that the clipped output
# store drops — do NOT add cross-row reductions without revisiting this.
# ----------------------------------------------------------------------------
def _enhance_mlp_body(f_ref, p_ref, wd_ref, bd_ref, wu_ref, bu_ref, o_ref):
    f = f_ref[...]                                          # [TB, TN, D] f32
    p = p_ref[...]                                          # [TB, 1, D]  f32 (scaled proto)

    sumsq = jnp.sum(f * f, axis=-1, keepdims=True)          # [TB, TN, 1]
    pdot = jnp.sum(f * p, axis=-1, keepdims=True)           # [TB, TN, 1]
    sim = pdot * jax.lax.rsqrt(jnp.maximum(sumsq, 1e-24))   # torch F.normalize semantics
    gate = jnp.clip(sim, 0.0, 6.0)                          # ReLU6
    enh = f * (gate + 1.0)                                  # [TB, TN, D]

    tb, tn, d = f.shape
    # Layout note: tn is kept a multiple of 8 (or == N) so this fold stays
    # copy-free (no (8,128)-boundary crossing).
    enh2 = enh.reshape(tb * tn, d).astype(jnp.bfloat16)     # fold batch into matmul M
    h = jnp.dot(enh2, wd_ref[...], preferred_element_type=jnp.float32) + bd_ref[...]
    h = jnp.maximum(h, 0.0).astype(jnp.bfloat16)            # ReLU
    out = jnp.dot(h, wu_ref[...], preferred_element_type=jnp.float32) + bu_ref[...]
    o_ref[...] = out.reshape(tb, tn, d).astype(o_ref.dtype)


def _enhance_mlp_kernel(f_ref, p_ref, wd_ref, bd_ref, wu_ref, bu_ref, o_ref):
    _enhance_mlp_body(f_ref, p_ref, wd_ref, bd_ref, wu_ref, bu_ref, o_ref)


def _enhance_mlp_kernel_aliased(f_ref, p_ref, wd_ref, bd_ref, wu_ref, bu_ref,
                                alias_ref, o_ref):
    # alias_ref is the raw HBM buffer aliased to the output; rows outside this
    # call's grid coverage keep their previously written contents.
    del alias_ref
    _enhance_mlp_body(f_ref, p_ref, wd_ref, bd_ref, wu_ref, bu_ref, o_ref)


def enhance_and_project(feat, proto_rows, w_down_bf, b_down, w_up_bf, b_up, *,
                        out_rows_total=None, out_row_offset=0, out_alias=None,
                        out_dtype=jnp.float32, target_block_bytes=None):
    """Fused enhancement + MLP writing a contiguous row range of a shared
    [out_rows_total, N, D] output buffer (removes the output HBM concat).

    feat:       [R, N, D] f32
    proto_rows: [R, D]    f32, already scaled by sqrt(D)*sign
    """
    R, N, D = feat.shape
    Dl = w_down_bf.shape[1]
    if out_rows_total is None:
        out_rows_total = out_row_offset + R
    if target_block_bytes is None:
        target_block_bytes = _block_budget_bytes()

    row_bytes = N * D * 4
    if row_bytes > target_block_bytes:
        # One batch-row per step; tile the token axis instead (sumsq/pdot
        # reduce only over D so token tiling is trivially correct).
        tb = 1
        tn = min(N, max(8, (target_block_bytes // (D * 4)) // 8 * 8))
    else:
        tn = N
        tb = int(max(1, min(R, target_block_bytes // row_bytes)))
        # Keep >= 2 steps along the parallel row axis so v7x megacore engages.
        tb = min(tb, max(1, pl.cdiv(R, 2)))
    if out_row_offset:
        # The output row offset must be an integer number of row blocks.
        tb = math.gcd(tb, out_row_offset)
    row_blocks_off = out_row_offset // tb

    grid = (pl.cdiv(R, tb), pl.cdiv(N, tn))
    proto3 = proto_rows[:, None, :]                         # [R, 1, D]

    in_specs = [pl.BlockSpec((tb, tn, D), lambda r, n: (r, n, 0)),
                pl.BlockSpec((tb, 1, D), lambda r, n: (r, 0, 0)),
                pl.BlockSpec((D, Dl), lambda r, n: (0, 0)),
                pl.BlockSpec((1, Dl), lambda r, n: (0, 0)),
                pl.BlockSpec((Dl, D), lambda r, n: (0, 0)),
                pl.BlockSpec((1, D), lambda r, n: (0, 0))]
    args = [feat, proto3, w_down_bf, b_down, w_up_bf, b_up]

    if out_alias is None:
        kernel = _enhance_mlp_kernel
        io_aliases = {}
    else:
        kernel = _enhance_mlp_kernel_aliased
        in_specs.append(pl.BlockSpec(memory_space=pl.ANY))   # raw HBM, no DMA
        args.append(out_alias)
        io_aliases = {len(args) - 1: 0}

    out_specs = pl.BlockSpec((tb, tn, D),
                             lambda r, n: (r + row_blocks_off, n, 0))

    in_blk = tb * tn * D * 4
    out_blk = tb * tn * D * 4                               # conservative (f32)
    wbytes = (D * Dl + Dl * D) * 2 + (Dl + D) * 4
    vmem_need = 2 * (in_blk + out_blk + tb * D * 4 + wbytes) + 4 * in_blk + (4 << 20)

    return pl.pallas_call(
        kernel,
        out_shape=jax.ShapeDtypeStruct((out_rows_total, N, D), out_dtype),
        grid=grid,
        in_specs=in_specs,
        out_specs=out_specs,
        input_output_aliases=io_aliases,
        compiler_params=pltpu.CompilerParams(
            dimension_semantics=("parallel", "parallel"),
            vmem_limit_bytes=_vmem_limit_bytes(vmem_need)),
    )(*args)


# ----------------------------------------------------------------------------
# Module forward (eval path)
# ----------------------------------------------------------------------------
def prototype_adaptive_module_forward(x, s_f, s_y, params, input_resolution):
    B, N, D = x.shape
    S = s_f.shape[0] // B
    h, w = input_resolution
    H, W = s_y.shape[-2], s_y.shape[-1]

    # F.interpolate(mode='nearest'):  src_idx = floor(out_idx * in/out)
    src_h = jnp.floor(jnp.arange(h) * (H / h)).astype(jnp.int32)
    src_w = jnp.floor(jnp.arange(w) * (W / w)).astype(jnp.int32)
    s_y_i = s_y[:, :, src_h, :][:, :, :, src_w]             # [B, S, h, w]
    mask = (s_y_i == 1.0).astype(jnp.float32).reshape(B, 1, S * N)

    # --- Pallas: prototype extraction (tiled reduction over S*N tokens) ---
    proto, sign = extract_semantic_prototype(s_f.reshape(B, S * N, D), mask)

    # --- eval-path prototype-bank selection (tiny; plain JAX glue) ---
    # TODO(synk): training-path update_prototype_bank (stateful momentum buffer write) not implemented.
    bank = params["prototype"]                               # [D, C]
    bank_n = bank / jnp.maximum(jnp.linalg.norm(bank, axis=0, keepdims=True), 1e-12)
    sp_n = proto / jnp.maximum(jnp.linalg.norm(proto, axis=1, keepdims=True), 1e-12)
    idx = jnp.argmax(sp_n @ bank_n, axis=1)                  # [B]
    new_proto = bank_n[:, idx].T                             # [B, D]
    new_proto = new_proto / jnp.maximum(
        jnp.linalg.norm(new_proto, axis=1, keepdims=True), 1e-12)

    proto_scaled = new_proto * (D ** 0.5) * sign[:, None]    # fold sqrt(D)*sign into prototype

    # bf16 MXU weights (f32 accumulation inside the kernel); biases stay f32
    wd_bf = params["w_down"].astype(jnp.bfloat16)
    wu_bf = params["w_up"].astype(jnp.bfloat16)

    # --- Pallas: fused enhancement + MLP.  Both calls write disjoint row
    #     ranges of ONE shared [B*(S+1), N, D] buffer: call 1 writes support
    #     rows [0, B*S), call 2 aliases the buffer (input_output_aliases) and
    #     writes query rows [B*S, B*(S+1)).  No HBM concat of either inputs or
    #     outputs.  Dropout(drop=0.0) is identity.
    R_total = B * (S + 1)
    proto_sup = jnp.repeat(proto_scaled, S, axis=0)          # [B*S, D] (tiny)

    out_buf = enhance_and_project(
        s_f, proto_sup, wd_bf, params["b_down"], wu_bf, params["b_up"],
        out_rows_total=R_total, out_row_offset=0)
    out = enhance_and_project(
        x, proto_scaled, wd_bf, params["b_down"], wu_bf, params["b_up"],
        out_rows_total=R_total, out_row_offset=B * S, out_alias=out_buf)
    # row ordering matches torch: all support rows first (batch-major), then query rows
    return out


# ----------------------------------------------------------------------------
# Plain-JAX f32 reference (for correctness check)
# ----------------------------------------------------------------------------
def reference_forward(x, s_f, s_y, params, input_resolution):
    B, N, D = x.shape
    S = s_f.shape[0] // B
    h, w = input_resolution
    H, W = s_y.shape[-2], s_y.shape[-1]
    src_h = jnp.floor(jnp.arange(h) * (H / h)).astype(jnp.int32)
    src_w = jnp.floor(jnp.arange(w) * (W / w)).astype(jnp.int32)
    s_y_i = s_y[:, :, src_h, :][:, :, :, src_w]
    mask = (s_y_i == 1.0).astype(jnp.float32).reshape(B, S * N, 1)
    s_f_b = s_f.reshape(B, S, N, D)
    cnt = jnp.sum(mask.reshape(B, -1), axis=1)
    proto = jnp.sum(mask * s_f_b.reshape(B, S * N, D), axis=1) / (cnt[:, None] + 1e-4)
    sign = jnp.where(cnt > 0.5, 1.0, cnt)
    bank = params["prototype"]
    bank_n = bank / jnp.maximum(jnp.linalg.norm(bank, axis=0, keepdims=True), 1e-12)
    sp_n = proto / jnp.maximum(jnp.linalg.norm(proto, axis=1, keepdims=True), 1e-12)
    idx = jnp.argmax(sp_n @ bank_n, axis=1)
    new_proto = bank_n[:, idx].T
    new_proto = new_proto / jnp.maximum(
        jnp.linalg.norm(new_proto, axis=1, keepdims=True), 1e-12)

    def enhance(feat):                                       # [B, S', N, D]
        fn = feat / jnp.maximum(jnp.linalg.norm(feat, axis=-1, keepdims=True), 1e-12)
        sim = jnp.einsum('bsnd,bd->bsn', fn, new_proto)
        sim = sim * (D ** 0.5) * sign[:, None, None]
        gate = jnp.clip(sim, 0.0, 6.0)
        return gate[..., None] * feat + feat

    eq = enhance(x[:, None])
    es = enhance(s_f_b)
    reg = jnp.concatenate([es.reshape(-1, N, D), eq[:, 0]], axis=0)
    hdn = jnp.maximum(reg @ params["w_down"] + params["b_down"][0], 0.0)
    return hdn @ params["w_up"] + params["b_up"][0]


# ----------------------------------------------------------------------------
if __name__ == "__main__":
    key = jax.random.PRNGKey(0)
    B, S = 2, 1
    D, C = 128, 4             # dim (multiple of 128 -> lane-dense stores), class_num
    hidden_ratio = 4
    Dl = D // hidden_ratio    # dim_low
    h = w = 8
    N = h * w
    H = W = 16

    k1, k2, k3, k4, k5, k6, k7, k8 = jax.random.split(key, 8)
    x = jax.random.normal(k1, (B, N, D), jnp.float32)
    s_f = jax.random.normal(k2, (B * S, N, D), jnp.float32)
    s_y = jax.random.bernoulli(k3, 0.4, (B, S, H, W)).astype(jnp.float32)

    prototype = jax.random.normal(k4, (D, C), jnp.float32)
    prototype = prototype / jnp.maximum(
        jnp.linalg.norm(prototype, axis=0, keepdims=True), 1e-12)  # as in __init__
    params = dict(
        prototype=prototype,
        w_down=jax.random.normal(k5, (D, Dl), jnp.float32) * 0.05,
        b_down=jax.random.normal(k6, (1, Dl), jnp.float32) * 0.01,
        w_up=jax.random.normal(k7, (Dl, D), jnp.float32) * 0.05,
        b_up=jax.random.normal(k8, (1, D), jnp.float32) * 0.01,
    )

    out = prototype_adaptive_module_forward(x, s_f, s_y, params, (h, w))
    out = jax.block_until_ready(out)

    ref = reference_forward(x, s_f, s_y, params, (h, w))
    assert out.shape == (B * (S + 1), N, D), out.shape
    # tolerance accounts for bf16 MXU operands (f32 accumulation) vs f32 reference
    assert jnp.allclose(out, ref, atol=3e-2, rtol=3e-2), float(jnp.max(jnp.abs(out - ref)))
    print("KERNEL_OK")
</pallas_src>

<mosaic_0001>
module attributes {stable_mosaic.version = 11 : i64} {
  func.func @kernel(%arg0: i32, %arg1: i32, %arg2: memref<1x64x128xf32, #tpu.memory_space<vmem>>, %arg3: memref<1x1x64xf32, #tpu.memory_space<vmem>>, %arg4: memref<1x1x128xf32, #tpu.memory_space<vmem>>, %arg5: memref<1x1x1xf32, #tpu.memory_space<vmem>>) attributes {dimension_semantics = [#tpu.dimension_semantics<parallel>, #tpu.dimension_semantics<arbitrary>], iteration_bounds = array<i64: 2, 1>, scalar_prefetch = 0 : i64, scratch_operands = 0 : i64, tpu.core_type = #tpu.core_type<tc>, window_params = [{transform_indices = @transform_0, window_bounds = array<i64: 1, 64, 128>}, {transform_indices = @transform_1, window_bounds = array<i64: 1, 1, 64>}, {transform_indices = @transform_2, window_bounds = array<i64: 1, 1, 128>}, {transform_indices = @transform_3, window_bounds = array<i64: 1, 1, 1>}]} {
    %c0_i32 = arith.constant 0 : i32
    %0 = arith.cmpi eq, %arg1, %c0_i32 : i32
    %1 = arith.extui %0 : i1 to i32
    %c0_i32_0 = arith.constant 0 : i32
    %2 = arith.cmpi ne, %1, %c0_i32_0 : i32
    scf.if %2 {
      %cst_21 = arith.constant 0.000000e+00 : f32
      %25 = vector.broadcast %cst_21 : f32 to vector<1x1x128xf32>
      %c0_22 = arith.constant 0 : index
      %c0_23 = arith.constant 0 : index
      %c0_24 = arith.constant 0 : index
      %26 = vector.load %arg4[%c0_22, %c0_23, %c0_24] : memref<1x1x128xf32, #tpu.memory_space<vmem>>, vector<1x1x128xf32>
      tpu.vector_store %arg4[%c0_22, %c0_23, %c0_24], %25 {strides = array<i32>} : memref<1x1x128xf32, #tpu.memory_space<vmem>>, vector<1x1x128xf32>,
      %cst_25 = arith.constant 0.000000e+00 : f32
      %27 = vector.broadcast %cst_25 : f32 to vector<1x1x1xf32>
      %c0_26 = arith.constant 0 : index
      %c0_27 = arith.constant 0 : index
      %c0_28 = arith.constant 0 : index
      %28 = vector.load %arg5[%c0_26, %c0_27, %c0_28] : memref<1x1x1xf32, #tpu.memory_space<vmem>>, vector<1x1x1xf32>
      tpu.vector_store %arg5[%c0_26, %c0_27, %c0_28], %27 {strides = array<i32>} : memref<1x1x1xf32, #tpu.memory_space<vmem>>, vector<1x1x1xf32>,
    } else {
    }
    %c0 = arith.constant 0 : index
    %c0_1 = arith.constant 0 : index
    %c0_2 = arith.constant 0 : index
    %3 = vector.load %arg2[%c0, %c0_1, %c0_2] : memref<1x64x128xf32, #tpu.memory_space<vmem>>, vector<1x64x128xf32>
    %4 = vector.shape_cast %3 : vector<1x64x128xf32> to vector<64x128xf32>
    %c0_3 = arith.constant 0 : index
    %c0_4 = arith.constant 0 : index
    %c0_5 = arith.constant 0 : index
    %5 = vector.load %arg3[%c0_3, %c0_4, %c0_5] : memref<1x1x64xf32, #tpu.memory_space<vmem>>, vector<1x1x64xf32>
    %6 = vector.shape_cast %5 : vector<1x1x64xf32> to vector<1x64xf32>
    %c0_6 = arith.constant 0 : index
    %c0_7 = arith.constant 0 : index
    %c0_8 = arith.constant 0 : index
    %7 = vector.load %arg4[%c0_6, %c0_7, %c0_8] : memref<1x1x128xf32, #tpu.memory_space<vmem>>, vector<1x1x128xf32>
    %8 = vector.shape_cast %7 : vector<1x1x128xf32> to vector<1x128xf32>
    %cst = arith.constant dense<0.000000e+00> : vector<1x128xf32>
    %9 = tpu.matmul %6, %4, %cst {dimension_numbers = #tpu.dot_dimension_numbers<[1], [0], [0], [1], [0, 0, 1, 1], [], []>} : vector<1x64xf32>, vector<64x128xf32>, vector<1x128xf32> -> vector<1x128xf32>
    %10 = arith.addf %8, %9 : vector<1x128xf32>
    %c0_9 = arith.constant 0 : index
    %c0_10 = arith.constant 0 : index
    %c0_11 = arith.constant 0 : index
    %11 = vector.load %arg4[%c0_9, %c0_10, %c0_11] : memref<1x1x128xf32, #tpu.memory_space<vmem>>, vector<1x1x128xf32>
    %12 = vector.shape_cast %11 : vector<1x1x128xf32> to vector<1x128xf32>
    %13 = vector.shape_cast %10 : vector<1x128xf32> to vector<1x1x128xf32>
    tpu.vector_store %arg4[%c0_9, %c0_10, %c0_11], %13 {strides = array<i32>} : memref<1x1x128xf32, #tpu.memory_space<vmem>>, vector<1x1x128xf32>,
    %c0_12 = arith.constant 0 : index
    %c0_13 = arith.constant 0 : index
    %c0_14 = arith.constant 0 : index
    %14 = vector.load %arg5[%c0_12, %c0_13, %c0_14] : memref<1x1x1xf32, #tpu.memory_space<vmem>>, vector<1x1x1xf32>
    %15 = vector.shape_cast %14 : vector<1x1x1xf32> to vector<1x1xf32>
    %cst_15 = arith.constant dense<0.000000e+00> : vector<1xf32>
    %16 = vector.multi_reduction <add>, %6, %cst_15 [1] : vector<1x64xf32> to vector<1xf32>
    %17 = vector.shape_cast %16 : vector<1xf32> to vector<1x1xf32>
    %18 = arith.addf %15, %17 : vector<1x1xf32>
    %c0_16 = arith.constant 0 : index
    %c0_17 = arith.constant 0 : index
    %c0_18 = arith.constant 0 : index
    %19 = vector.load %arg5[%c0_16, %c0_17, %c0_18] : memref<1x1x1xf32, #tpu.memory_space<vmem>>, vector<1x1x1xf32>
    %20 = vector.shape_cast %19 : vector<1x1x1xf32> to vector<1x1xf32>
    %21 = vector.shape_cast %18 : vector<1x1xf32> to vector<1x1x1xf32>
    tpu.vector_store %arg5[%c0_16, %c0_17, %c0_18], %21 {strides = array<i32>} : memref<1x1x1xf32, #tpu.memory_space<vmem>>, vector<1x1x1xf32>,
    %c0_i32_19 = arith.constant 0 : i32
    %22 = arith.cmpi eq, %arg1, %c0_i32_19 : i32
    %23 = arith.extui %22 : i1 to i32
    %c0_i32_20 = arith.constant 0 : i32
    %24 = arith.cmpi ne, %23, %c0_i32_20 : i32
    scf.if %24 {
      %c0_21 = arith.constant 0 : index
      %c0_22 = arith.constant 0 : index
      %c0_23 = arith.constant 0 : index
      %25 = vector.load %arg5[%c0_21, %c0_22, %c0_23] : memref<1x1x1xf32, #tpu.memory_space<vmem>>, vector<1x1x1xf32>
      %26 = vector.shape_cast %25 : vector<1x1x1xf32> to vector<1x1xf32>
      %c0_24 = arith.constant 0 : index
      %c0_25 = arith.constant 0 : index
      %c0_26 = arith.constant 0 : index
      %27 = vector.load %arg4[%c0_24, %c0_25, %c0_26] : memref<1x1x128xf32, #tpu.memory_space<vmem>>, vector<1x1x128xf32>
      %28 = vector.shape_cast %27 : vector<1x1x128xf32> to vector<1x128xf32>
      %cst_27 = arith.constant 9.99999974E-5 : f32
      %29 = vector.broadcast %cst_27 : f32 to vector<1x1xf32>
      %30 = arith.addf %26, %29 : vector<1x1xf32>
      %31 = vector.broadcast %30 : vector<1x1xf32> to vector<1x128xf32>
      %32 = arith.divf %28, %31 : vector<1x128xf32>
      %c0_28 = arith.constant 0 : index
      %c0_29 = arith.constant 0 : index
      %c0_30 = arith.constant 0 : index
      %33 = vector.load %arg4[%c0_28, %c0_29, %c0_30] : memref<1x1x128xf32, #tpu.memory_space<vmem>>, vector<1x1x128xf32>
      %34 = vector.shape_cast %33 : vector<1x1x128xf32> to vector<1x128xf32>
      %35 = vector.shape_cast %32 : vector<1x128xf32> to vector<1x1x128xf32>
      tpu.vector_store %arg4[%c0_28, %c0_29, %c0_30], %35 {strides = array<i32>} : memref<1x1x128xf32, #tpu.memory_space<vmem>>, vector<1x1x128xf32>,
      %cst_31 = arith.constant 5.000000e-01 : f32
      %36 = vector.broadcast %cst_31 : f32 to vector<1x1xf32>
      %37 = arith.cmpf ogt, %26, %36 : vector<1x1xf32>
      %cst_32 = arith.constant 1.000000e+00 : f32
      %38 = vector.broadcast %cst_32 : f32 to vector<1x1xf32>
      %39 = arith.select %37, %38, %26 : vector<1x1xi1>, vector<1x1xf32>
      %c0_33 = arith.constant 0 : index
      %c0_34 = arith.constant 0 : index
      %c0_35 = arith.constant 0 : index
      %40 = vector.load %arg5[%c0_33, %c0_34, %c0_35] : memref<1x1x1xf32, #tpu.memory_space<vmem>>, vector<1x1x1xf32>
      %41 = vector.shape_cast %40 : vector<1x1x1xf32> to vector<1x1xf32>
      %42 = vector.shape_cast %39 : vector<1x1xf32> to vector<1x1x1xf32>
      tpu.vector_store %arg5[%c0_33, %c0_34, %c0_35], %42 {strides = array<i32>} : memref<1x1x1xf32, #tpu.memory_space<vmem>>, vector<1x1x1xf32>,
    } else {
    }
    return
  }
  func.func @transform_0(%arg0: i32, %arg1: i32) -> (i32, i32, i32) {
    %c0_i32 = arith.constant 0 : i32
    %c0_i32_0 = arith.constant 0 : i32
    return %arg0, %arg1, %c0_i32 : i32, i32, i32
  }
  func.func @transform_1(%arg0: i32, %arg1: i32) -> (i32, i32, i32) {
    %c0_i32 = arith.constant 0 : i32
    %c0_i32_0 = arith.constant 0 : i32
    return %arg0, %c0_i32, %arg1 : i32, i32, i32
  }
  func.func @transform_2(%arg0: i32, %arg1: i32) -> (i32, i32, i32) {
    %c0_i32 = arith.constant 0 : i32
    %c0_i32_0 = arith.constant 0 : i32
    %c0_i32_1 = arith.constant 0 : i32
    return %arg0, %c0_i32, %c0_i32_0 : i32, i32, i32
  }
  func.func @transform_3(%arg0: i32, %arg1: i32) -> (i32, i32, i32) {
    %c0_i32 = arith.constant 0 : i32
    %c0_i32_0 = arith.constant 0 : i32
    %c0_i32_1 = arith.constant 0 : i32
    return %arg0, %c0_i32, %c0_i32_0 : i32, i32, i32
  }
}

</mosaic_0001>

<llo_original>
// kernel: tpu_custom_call.1
$region0: #{tpu_custom_call.1}
  #allocation0 [shape = 'u32[]', space=smem, size = 0x4, offset = 0x4, fixed_abs, tag = 'smem constant byte address 0x4 - core index']
  #allocation1 [shape = 'u32[144,128]{1,0:T(1,128)}', space=vmem, size = 0x12000, scoped, tag = 'internal scratch']
  %s0 = inlined_call_operand.hbm [shape: f32[2,64,128], index: 0, kind: input, shape index: {}]
  %s1 = inlined_call_operand.vmem [shape: f32[2,1,64], index: 1, kind: input, shape index: {}]
  %s2 = inlined_call_operand.hbm [shape: f32[2,1,128], index: 2, kind: output, shape index: {0}]
  %s3 = inlined_call_operand.vmem [shape: f32[2,1,1], index: 3, kind: output, shape index: {1}]
  %4 = xla_tuple %s2, %s3
  %s5 = sld [smem:[#allocation0]]
  $region61: #{tpu_custom_call.1} parent=0
    _
  %s7 = ssub.s32 1, %s5
  %s8 = scalar_select 0, %s7, %s5
  $region1: #{tpu_custom_call.1} parent=0
    #allocation2 [shape = 'u8[65536]{0}', space=vmem, size = 0x10000, scoped, tag = 'input window, operand 0']
    #allocation3 [shape = 's32[2]{0}', space=sflag, size = 0x8, scoped, tag = 'scoped memory for tpu_custom_call.1']
    #allocation4 [shape = 's32[2]{0}', space=sflag, size = 0x8, scoped, tag = 'scoped memory for tpu_custom_call.1']
    #allocation5 [shape = 'u8[1024]{0}', space=vmem, size = 0x400, scoped, tag = 'output window, operand 0']
    %9 = vsyncpa [#allocation3], 0
    %s10 = scalar_lea.sflag [#allocation3], 1
    %11 = vsyncpa %s10, 0
    %12 = vsyncpa [#allocation4], 0
    %s13 = scalar_lea.sflag [#allocation4], 1
    %14 = vsyncpa %s13, 0
    loop: start=0, step=1, limit=4
    $region2: #{tpu_custom_call.1} parent=1 // loop_pre_header
      _
    $region3: #{tpu_custom_call.1} parent=1 // loop_header
      %s16 = sphi 0, %s20
      %p17 = scmp.ge.s32.totalorder %s16, 4
      %s23 = sphi 0, %s35
      %s24 = sphi 0, %s31
      %s25 = sphi 0, %s23
      %s26 = sphi 0, %s24
      %s27 = sphi 0, %s25
      %s28 = sphi 0, %s26
      %s40 = sphi 0, %s42
      %s43 = sphi 0, %s40
      %s44 = sphi 0, %s43
      %s60 = sphi 0, %s44
      %s68 = sphi 0, %s70
      %s71 = sphi 0, %s68
      %s72 = sphi 0, %s71
      %s88 = sphi 0, %s72
      %s94 = sphi 0, %s96
      %s97 = sphi 0, %s94
      %s98 = sphi 0, %s97
      %s114 = sphi 0, %s98
      %s120 = sphi 0, %s122
      %s123 = sphi 0, %s120
      %s124 = sphi 0, %s123
      %s140 = sphi 0, %s124
    $region4: #{tpu_custom_call.1} parent=1 // loop_header_branch
      %19 = sbr.rel (%p17) target = $region8
    $region5: #{tpu_custom_call.1} parent=1 // loop_body
      %s21 = ssub.s32 %s16, 1
      %s22 = ssub.s32 %s16, 2
      %s29 = sadd.s32 1, %s24
      %p30 = scmp.ge.s32.totalorder %s29, 1
      %s31 = scalar_select %p30, 0, %s29
      %s32 = sadd.s32 1, %s23
      %s33 = scalar_select %p30, %s32, %s23
      %p34 = scmp.ge.s32.totalorder %s33, 2
      %s35 = scalar_select %p34, 0, %s33
      %s36 = ssub.s32 %s23, %s35
      %s37 = ssub.s32 %s24, %s31
      %s38 = sor.u32 %s36, %s37
      %p39 = scmp.eq.s32.totalorder %s38, 0
      %s41 = sadd.s32 %s40, 1
      %s42 = scalar_select %p39, %s40, %s41
      %p45 = pneg %p39
      %p46 = scmp.eq.s32.totalorder %s16, 1
      %p47 = por %p45, %p46
      %p48 = scmp.ne.s32.totalorder %s40, %s43
      %p49 = scmp.eq.s32.totalorder %s16, 0
      %p50 = por %p48, %p49
      %p51 = scmp.ne.s32.totalorder %s40, %s43
      %p52 = scmp.eq.s32.totalorder %s21, 1
      %p53 = por %p51, %p52
      %p54 = scmp.ne.s32.totalorder %s43, %s44
      %p55 = scmp.eq.s32.totalorder %s21, 0
      %p56 = por %p54, %p55
      %p57 = scmp.ne.s32.totalorder %s43, %s44
      %p58 = scmp.eq.s32.totalorder %s22, 1
      %p59 = por %p57, %p58
      %p61 = scmp.ne.s32.totalorder %s44, %s60
      %p62 = scmp.eq.s32.totalorder %s22, 0
      %p63 = por %p61, %p62
      %s64 = ssub.s32 %s23, %s35
      %s65 = ssub.s32 %s24, %s31
      %s66 = sor.u32 %s64, %s65
      %p67 = scmp.eq.s32.totalorder %s66, 0
      %s69 = sadd.s32 %s68, 1
      %s70 = scalar_select %p67, %s68, %s69
      %p73 = pneg %p67
      %p74 = scmp.eq.s32.totalorder %s16, 1
      %p75 = por %p73, %p74
      %p76 = scmp.ne.s32.totalorder %s68, %s71
      %p77 = scmp.eq.s32.totalorder %s16, 0
      %p78 = por %p76, %p77
      %p79 = scmp.ne.s32.totalorder %s68, %s71
      %p80 = scmp.eq.s32.totalorder %s21, 1
      %p81 = por %p79, %p80
      %p82 = scmp.ne.s32.totalorder %s71, %s72
      %p83 = scmp.eq.s32.totalorder %s21, 0
      %p84 = por %p82, %p83
      %p85 = scmp.ne.s32.totalorder %s71, %s72
      %p86 = scmp.eq.s32.totalorder %s22, 1
      %p87 = por %p85, %p86
      %p89 = scmp.ne.s32.totalorder %s72, %s88
      %p90 = scmp.eq.s32.totalorder %s22, 0
      %p91 = por %p89, %p90
      %s92 = ssub.s32 %s23, %s35
      %p93 = scmp.eq.s32.totalorder %s92, 0
      %s95 = sadd.s32 %s94, 1
      %s96 = scalar_select %p93, %s94, %s95
      %p99 = pneg %p93
      %p100 = scmp.eq.s32.totalorder %s16, 1
      %p101 = por %p99, %p100
      %p102 = scmp.ne.s32.totalorder %s94, %s97
      %p103 = scmp.eq.s32.totalorder %s16, 0
      %p104 = por %p102, %p103
      %p105 = scmp.ne.s32.totalorder %s94, %s97
      %p106 = scmp.eq.s32.totalorder %s21, 1
      %p107 = por %p105, %p106
      %p108 = scmp.ne.s32.totalorder %s97, %s98
      %p109 = scmp.eq.s32.totalorder %s21, 0
      %p110 = por %p108, %p109
      %p111 = scmp.ne.s32.totalorder %s97, %s98
      %p112 = scmp.eq.s32.totalorder %s22, 1
      %p113 = por %p111, %p112
      %p115 = scmp.ne.s32.totalorder %s98, %s114
      %p116 = scmp.eq.s32.totalorder %s22, 0
      %p117 = por %p115, %p116
      %s118 = ssub.s32 %s23, %s35
      %p119 = scmp.eq.s32.totalorder %s118, 0
      %s121 = sadd.s32 %s120, 1
      %s122 = scalar_select %p119, %s120, %s121
      %p125 = pneg %p119
      %p126 = scmp.eq.s32.totalorder %s16, 1
      %p127 = por %p125, %p126
      %p128 = scmp.ne.s32.totalorder %s120, %s123
      %p129 = scmp.eq.s32.totalorder %s16, 0
      %p130 = por %p128, %p129
      %p131 = scmp.ne.s32.totalorder %s120, %s123
      %p132 = scmp.eq.s32.totalorder %s21, 1
      %p133 = por %p131, %p132
      %p134 = scmp.ne.s32.totalorder %s123, %s124
      %p135 = scmp.eq.s32.totalorder %s21, 0
      %p136 = por %p134, %p135
      %p137 = scmp.ne.s32.totalorder %s123, %s124
      %p138 = scmp.eq.s32.totalorder %s22, 1
      %p139 = por %p137, %p138
      %p141 = scmp.ne.s32.totalorder %s124, %s140
      %p142 = scmp.eq.s32.totalorder %s22, 0
      %p143 = por %p141, %p142
      %p144 = scmp.le.s32.totalorder 1, %s16
      %p145 = scmp.lt.s32.totalorder %s16, 3
      %p146 = pnand %p144, %p145
      %p147 = pneg %p146
      // Predicated region
      $region9: #{tpu_custom_call.1} parent=5 // pred_check
        _
      $region10: #{tpu_custom_call.1} parent=5 // pred_check_branch
        %149 = sbr.rel (%p146) target = $region12
      $region11: #{tpu_custom_call.1} parent=5 // pred_region
        %s150 = ssub.s32 %s16, 1
      $region12: #{tpu_custom_call.1} parent=5 // pred_fallthru
        _
      %p151 = scmp.lt.s32.totalorder %s16, 2
      // Predicated region
      $region13: #{tpu_custom_call.1} parent=5 // pred_check
        %p152 = pneg %p151
      $region14: #{tpu_custom_call.1} parent=5 // pred_check_branch
        %154 = sbr.rel (%p152) target = $region16
      $region15: #{tpu_custom_call.1} parent=5 // pred_region
        // Predicated region
        $region17: #{tpu_custom_call.1} parent=15 // pred_check
          %p155 = pneg %p50
        $region18: #{tpu_custom_call.1} parent=15 // pred_check_branch
          %157 = sbr.rel (%p155) target = $region20
        $region19: #{tpu_custom_call.1} parent=15 // pred_region
          %s158 = sand.u32 %s40, 1
          %s159 = scalar_lea.sflag [#allocation3], %s158
          %s160 = sand.u32 %s40, 1
          %s161 = smul.addr %s160, 64
          %s162 = scalar_lea.vmem [#allocation2], %s161
          %s163 = smul.u32 8, %s24
          %s165 = ssub.s32 1024, 1024
          %166 = vsyncadd %s159, %s165
          %s167 = smul.addr %s23, 8
          %s168 = sadd.s32 %s163, %s167
          %s169 = smul.addr %s168, 128
          %s170 = scalar_lea.hbm %s0, %s169
          %s171 = sshll.u32 %s162, 4
          %s172 = int_to_ptr.vmem [resolvable:$true] %s171
          %177 = dma.hbm_to_vmem [thread:$0]  %s170, 1024, %s172, %s159, 128, 128, 8
        $region20: #{tpu_custom_call.1} parent=15 // pred_fallthru
          _
        // Predicated region
        $region21: #{tpu_custom_call.1} parent=15 // pred_check
          %p178 = pneg %p78
        $region22: #{tpu_custom_call.1} parent=15 // pred_check_branch
          %180 = sbr.rel (%p178) target = $region24
        $region23: #{tpu_custom_call.1} parent=15 // pred_region
          %p181 = scmp.lt.s32.totalorder %s23, 1
          %s182 = scalar_select %p181, %s23, 1
          %p183 = scmp.lt.s32.totalorder %s24, 0
          %s184 = scalar_select %p183, %s24, 0
          %s185 = sadd.s32 %s184, %s182
          %s186 = scalar_lea.vmem %s1, %s185
        $region24: #{tpu_custom_call.1} parent=15 // pred_fallthru
          _
      $region16: #{tpu_custom_call.1} parent=5 // pred_fallthru
        _
      %p187 = scmp.le.s32.totalorder 1, %s16
      %p188 = scmp.lt.s32.totalorder %s16, 3
      %p189 = pnand %p187, %p188
      %p190 = pneg %p189
      // Predicated region
      $region25: #{tpu_custom_call.1} parent=5 // pred_check
        _
      $region26: #{tpu_custom_call.1} parent=5 // pred_check_branch
        %192 = sbr.rel (%p189) target = $region28
      $region27: #{tpu_custom_call.1} parent=5 // pred_region
        %s193 = ssub.s32 %s16, 1
        %s194 = sand.u32 %s43, 1
        %s195 = scalar_lea.sflag [#allocation3], %s194
        %s196 = sand.u32 %s43, 1
        %s197 = smul.addr %s196, 64
        %s198 = scalar_lea.vmem [#allocation2], %s197
        // Predicated region
        $region29: #{tpu_custom_call.1} parent=27 // pred_check
          %p199 = pneg %p56
        $region30: #{tpu_custom_call.1} parent=27 // pred_check_branch
          %201 = sbr.rel (%p199) target = $region32
        $region31: #{tpu_custom_call.1} parent=27 // pred_region
          %202 = dma.done %s195, 1024
        $region32: #{tpu_custom_call.1} parent=27 // pred_fallthru
          _
        %s203 = sand.u32 %s43, 1
        %s204 = scalar_lea.sflag [#allocation3], %s203
        %s205 = sand.u32 %s43, 1
        %s206 = smul.addr %s205, 64
        %s207 = scalar_lea.vmem [#allocation2], %s206
        %p208 = pneg %p56
        %p209 = pneg %p53
        %p210 = scmp.lt.s32.totalorder %s25, 1
        %s211 = scalar_select %p210, %s25, 1
        %p212 = scmp.lt.s32.totalorder %s26, 0
        %s213 = scalar_select %p212, %s26, 0
        %s214 = sadd.s32 %s213, %s211
        %s215 = scalar_lea.vmem %s1, %s214
        %p216 = pneg %p84
        %p217 = pneg %p81
        %p218 = pneg %p110
        %p219 = pneg %p107
        %s220 = sand.u32 %s97, 1
        %s221 = scalar_lea.sflag [#allocation4], %s220
        %s222 = sand.u32 %s97, 1
        %s223 = scalar_lea.vmem [#allocation5], %s222
        %p224 = pneg %p136
        %p225 = pneg %p133
        %p226 = scmp.lt.s32.totalorder %s25, 1
        %s227 = scalar_select %p226, %s25, 1
        %s228 = scalar_lea.vmem %s3, %s227
        %s229 = smul.u32 8, %s26
        %p230 = scmp.lt.s32.totalorder %s25, 1
        %s231 = scalar_select %p230, %s25, 1
        %p232 = scmp.lt.s32.totalorder %s26, 0
        %s233 = scalar_select %p232, %s26, 0
        %s234 = sadd.s32 %s233, %s231
        %s235 = scalar_lea.vmem %s1, %s234
        %p236 = scmp.lt.s32.totalorder %s25, 1
        %s237 = scalar_select %p236, %s25, 1
        %s238 = scalar_lea.vmem %s3, %s237
        %p239 = scmp.eq.s32.totalorder %s26, 0
        // Predicated region
        $region33: #{tpu_custom_call.1} parent=27 // pred_check
          %p240 = pneg %p239
        $region34: #{tpu_custom_call.1} parent=27 // pred_check_branch
          %242 = sbr.rel (%p240) target = $region36
        $region35: #{tpu_custom_call.1} parent=27 // pred_region
          %243 = vst [vmem:[%s223] sm:$0x1] 0.0
          %vm244 = vcmask 0
          %245 = vst.msk [vmem:[%s238] sm:$0x1] %vm244, 0.0
        $region36: #{tpu_custom_call.1} parent=27 // pred_fallthru
          _
        %v246 = vld [vmem:[%s198] sm:$0xff]
        %v247 = vld [vmem:[%s198 + $0x8] sm:$0xff]
        %v248 = vld [vmem:[%s198 + $0x10] sm:$0xff]
        %v249 = vld [vmem:[%s198 + $0x18] sm:$0xff]
        %v250 = vld [vmem:[%s198 + $0x20] sm:$0xff]
        %v251 = vld [vmem:[%s198 + $0x28] sm:$0xff]
        %v252 = vld [vmem:[%s198 + $0x30] sm:$0xff]
        %v253 = vld [vmem:[%s198 + $0x38] sm:$0xff]
        %v254 = vld [vmem:[%s235] sm:$0x1]
        %v255 = vld [vmem:[%s223] sm:$0x1]
        %vm256 = vcmask 523264
        %v258 = vsel %vm256, %v254, 0
        %260 = vmatprep.subr.mxu0 0.0
        %261 = vmatpush1.msra.mxu0 %v246
        %262 = vmatprep.subr.mxu0 0.0
        %263 = vmatpush1.msra.mxu0 %v247
        %264 = vmatprep.subr.mxu0 0.0
        %265 = vmatpush1.msra.mxu0 %v248
        %266 = vmatprep.subr.mxu0 0.0
        %267 = vmatpush1.msra.mxu0 %v249
        %268 = vmatprep.subr.mxu0 0.0
        %269 = vmatpush1.msra.mxu0 %v250
        %270 = vmatprep.subr.mxu0 0.0
        %271 = vmatpush1.msra.mxu0 %v251
        %272 = vmatprep.subr.mxu0 0.0
        %273 = vmatpush1.msra.mxu0 %v252
        %274 = vmatprep.subr.mxu0 0.0
        %275 = vmatpush1.msra.mxu0 %v253
        %276 = vmatprep.subr.mxu0 0.0
        %277 = vmatpush1.msra.mxu0 0.0
        %278 = vmatprep.subr.mxu0 0.0
        %279 = vmatpush1.msra.mxu0 0.0
        %280 = vmatprep.subr.mxu0 0.0
        %281 = vmatpush1.msra.mxu0 0.0
        %282 = vmatprep.subr.mxu0 0.0
        %283 = vmatpush1.msra.mxu0 0.0
        %284 = vmatprep.subr.mxu0 0.0
        %285 = vmatpush1.msra.mxu0 0.0
        %286 = vmatprep.subr.mxu0 0.0
        %287 = vmatpush1.msra.mxu0 0.0
        %288 = vmatprep.subr.mxu0 0.0
        %289 = vmatpush1.msra.mxu0 0.0
        %290 = vmatprep.subr.mxu0 0.0
        %291 = vmatpush1.msra.mxu0 0.0
        %292 = vmatprep.subr.mxu0 0.0
        %293 = vmatpush1.msra.mxu0 0.0
        %294 = vmatprep.subr.mxu0 0.0
        %295 = vmatpush1.msra.mxu0 0.0
        %296 = vmatprep.subr.mxu0 0.0
        %297 = vmatpush1.msra.mxu0 0.0
        %298 = vmatprep.subr.mxu0 0.0
        %299 = vmatpush1.msra.mxu0 0.0
        %300 = vmatprep.subr.mxu0 0.0
        %301 = vmatpush1.msra.mxu0 0.0
        %302 = vmatprep.subr.mxu0 0.0
        %303 = vmatpush1.msra.mxu0 0.0
        %304 = vmatprep.subr.mxu0 0.0
        %305 = vmatpush1.msra.mxu0 0.0
        %306 = vmatprep.subr.mxu0 0.0
        %307 = vmatpush1.msra.mxu0 0.0
        %308 = vmatprep.subr.mxu0 0.0
        %309 = vmatpush1.msra.mxu0 0.0
        %310 = vmatprep.subr.mxu0 0.0
        %311 = vmatpush1.msra.mxu0 0.0
        %312 = vmatprep.subr.mxu0 0.0
        %313 = vmatpush1.msra.mxu0 0.0
        %314 = vmatprep.subr.mxu0 0.0
        %315 = vmatpush1.msra.mxu0 0.0
        %316 = vmatprep.subr.mxu0 0.0
        %317 = vmatpush1.msra.mxu0 0.0
        %318 = vmatprep.subr.mxu0 0.0
        %319 = vmatpush1.msra.mxu0 0.0
        %320 = vmatprep.subr.mxu0 0.0
        %321 = vmatpush1.msra.mxu0 0.0
        %322 = vmatprep.subr.mxu0 0.0
        %323 = vmatpush1.msra.mxu0 0.0
        %324 = vmatprep.mubr.f32.mxu0 0.0
        %325 = vmatmul.mubr.f32.gmra.mrb[0].mxu0 %v258
        %v326 = vpop.f32.mrb[0].mxu0
        %v327 = vadd.f32 0.0, %v326
        %v328 = vpop.f32.mrb[0].mxu0
        %329 = vdwg.mxu0
        %v330 = vadd.f32 %v255, %v327
        %331 = vst [vmem:[%s223] sm:$0x1] %v330
        %v332 = vld [vmem:[%s238] sm:$0x1]
        %vm333 = vcmask 516096
        %v334 = vsel %vm333, %v254, 0.0
        %335 = vadd.xlane.f32.xlu0 %v334
        %v336 = vpop.xlane.xlu0 %335
        %v337 = vadd.f32 %v332, %v336
        %vm338 = vcmask 0
        %339 = vst.msk [vmem:[%s238] sm:$0x1] %vm338, %v337
        // Predicated region
        $region37: #{tpu_custom_call.1} parent=27 // pred_check
          %p340 = pneg %p239
        $region38: #{tpu_custom_call.1} parent=27 // pred_check_branch
          %342 = sbr.rel (%p340) target = $region40
        $region39: #{tpu_custom_call.1} parent=27 // pred_region
          %v343 = vld [vmem:[%s238] sm:$0x1]
          %v344 = vld [vmem:[%s223] sm:$0x1]
          %v345 = vadd.f32 %v343, 0.0001
          %347 = vset.pattern.permute.xlu0 0
          %348 = vperm.xlu0 %347, %v345
          %v349 = vpop.permute.xlu0 %348
          %v351 = vlaneseq
          %v352 = vshrl.u32 %v351, 7
          %v353 = vsub.s32 0, %v352
          %v354 = vrot.slane %v349, %v353
          %v355 = vrcp.pop %v354
          %v356 = vmul.f32 %v344, %v355
          %357 = vst [vmem:[%s223] sm:$0x1] %v356
          %vm358 = vcmp.gt.f32.partialorder %v343, 0.5
          %v359 = vsel %vm358, 1.0, %v343
          %360 = vst.msk [vmem:[%s238] sm:$0x1] %vm338, %v359
        $region40: #{tpu_custom_call.1} parent=27 // pred_fallthru
          _
        %s361 = sand.u32 %s97, 1
        %s362 = scalar_lea.sflag [#allocation4], %s361
        %s363 = sand.u32 %s97, 1
        %s364 = scalar_lea.vmem [#allocation5], %s363
        %p365 = scmp.lt.s32.totalorder %s25, 1
        %s366 = scalar_select %p365, %s25, 1
        %s367 = scalar_lea.vmem %s3, %s366
        // Predicated region
        $region41: #{tpu_custom_call.1} parent=27 // pred_check
          %p368 = pneg %p107
        $region42: #{tpu_custom_call.1} parent=27 // pred_check_branch
          %370 = sbr.rel (%p368) target = $region44
        $region43: #{tpu_custom_call.1} parent=27 // pred_region
          %s372 = ssub.s32 16, 16
          %373 = vsyncadd %s362, %s372
          %s374 = smul.addr %s25, 16
          %s375 = scalar_lea.hbm %s2, %s374
          %s377 = sshll.u32 %s364, 4
          %s378 = int_to_ptr.vmem [resolvable:$true] %s377
          %380 = dma.vmem_to_hbm [thread:$0]  %s378, 16, %s375, %s362
        $region44: #{tpu_custom_call.1} parent=27 // pred_fallthru
          _
        // Predicated region
        $region45: #{tpu_custom_call.1} parent=27 // pred_check
          %p381 = pneg %p133
        $region46: #{tpu_custom_call.1} parent=27 // pred_check_branch
          %383 = sbr.rel (%p381) target = $region48
        $region47: #{tpu_custom_call.1} parent=27 // pred_region
          _
        $region48: #{tpu_custom_call.1} parent=27 // pred_fallthru
          _
      $region28: #{tpu_custom_call.1} parent=5 // pred_fallthru
        _
      %p384 = scmp.le.s32.totalorder 2, %s16
      // Predicated region
      $region49: #{tpu_custom_call.1} parent=5 // pred_check
        %p385 = pneg %p384
      $region50: #{tpu_custom_call.1} parent=5 // pred_check_branch
        %387 = sbr.rel (%p385) target = $region52
      $region51: #{tpu_custom_call.1} parent=5 // pred_region
        %s388 = ssub.s32 %s16, 2
        // Predicated region
        $region53: #{tpu_custom_call.1} parent=51 // pred_check
          %p389 = pneg %p113
        $region54: #{tpu_custom_call.1} parent=51 // pred_check_branch
          %391 = sbr.rel (%p389) target = $region56
        $region55: #{tpu_custom_call.1} parent=51 // pred_region
          %s392 = sand.u32 %s98, 1
          %s393 = scalar_lea.sflag [#allocation4], %s392
          %s394 = sand.u32 %s98, 1
          %s395 = scalar_lea.vmem [#allocation5], %s394
          %396 = dma.done %s393, 16
        $region56: #{tpu_custom_call.1} parent=51 // pred_fallthru
          _
        // Predicated region
        $region57: #{tpu_custom_call.1} parent=51 // pred_check
          %p397 = pneg %p139
        $region58: #{tpu_custom_call.1} parent=51 // pred_check_branch
          %399 = sbr.rel (%p397) target = $region60
        $region59: #{tpu_custom_call.1} parent=51 // pred_region
          %p400 = scmp.lt.s32.totalorder %s27, 1
          %s401 = scalar_select %p400, %s27, 1
          %s402 = scalar_lea.vmem %s3, %s401
        $region60: #{tpu_custom_call.1} parent=51 // pred_fallthru
          _
      $region52: #{tpu_custom_call.1} parent=5 // pred_fallthru
        _
    $region6: #{tpu_custom_call.1} parent=1 // loop_footer
      %s20 = sadd.s32 1, %s16
    $region7: #{tpu_custom_call.1} parent=1 // loop_footer_branch
      %15 = sbr.rel target = $region3
    $region8: #{tpu_custom_call.1} parent=1 // loop_exit
      _
    %403 = vsyncpa [#allocation3], 1
    %s404 = scalar_lea.sflag [#allocation3], 1
    %405 = vsyncpa %s404, 1
    %406 = vsyncpa [#allocation4], 1
    %s407 = scalar_lea.sflag [#allocation4], 1
    %408 = vsyncpa %s407, 1

</llo_original>
